<compile_context>
chip_gen: v5e
topology: v5e:2x2
jax: 0.10.0
libtpu: 0.0.40
codegen_flags: <defaults>
</compile_context>

<pallas_src>
import functools

import jax
import jax.numpy as jnp
from jax.experimental import pallas as pl
from jax.experimental.pallas import tpu as pltpu

# Batch tile for the streaming (grid) path.  1024 rows reaches ~85% of the
# HBM roofline (vs ~63% at 256) and keeps the grid length >= 2 for any batch
# that takes this path, so v7x's second TensorCore has work to shard.
BATCH_TILE = 1024

# Batches up to this many rows run gridless: whole arrays VMEM-resident, no
# pipeline machinery, no per-step overhead.  At 4096 rows the f32 buffers are
# well under 1 MiB total -- far below every generation's scoped-VMEM default
# (32 MiB on v7x, 128 MiB physical on v5e/v6e).
GRIDLESS_MAX_ROWS = 4096


# ---------------------------------------------------------------------------
# Fused Pallas kernel: input mask + L x (Linear -> activation -> mask)
# ---------------------------------------------------------------------------
def fused_forward_kernel(*refs, acts):
    """refs = (x, input_mask, [w, b, mask] * L, out).

    All arrays are at their REAL (unpadded) shapes:
      x (bt, f_in), w (k, n), b/m (1, n), out (bt, f_out).
    """
    x_ref, im_ref = refs[0], refs[1]
    o_ref = refs[-1]
    layer_refs = refs[2:-1]

    # Input mask: x[m == 1] = 1, x[m == -1] = 0.  Substitution value for a
    # masked lane is (m + 1)/2  (1 -> 1, -1 -> 0): one compare + one select.
    im = im_ref[...]
    x = jnp.where(im != 0.0, (im + 1.0) * 0.5, x_ref[...])

    for li, act in enumerate(acts):
        w_ref, b_ref, m_ref = layer_refs[3 * li:3 * li + 3]
        pre = jnp.dot(x, w_ref[...], preferred_element_type=jnp.float32)
        pre = pre + b_ref[...]
        m = m_ref[...]                                   # (1, n) broadcast
        if act == "relu":
            # mask==1 passes through the activation *input* (pre-activation).
            a = jnp.maximum(pre, 0.0)
            x = jnp.where(m == 1.0, pre, jnp.where(m == -1.0, 0.0, a))
        elif act == "tanh":
            # Substitution value for masked lanes is exactly m (1 / -1).
            x = jnp.where(m != 0.0, m, jnp.tanh(pre))
        elif act == "sigmoid":
            # sigmoid(x) = 0.5*tanh(0.5*x) + 0.5 : single EUP op (no exp+rcp).
            a = 0.5 * jnp.tanh(0.5 * pre) + 0.5
            x = jnp.where(m != 0.0, (m + 1.0) * 0.5, a)
        elif act == "none":
            x = pre
        else:
            raise ValueError(f"unknown activation {act}")

    o_ref[...] = x.astype(o_ref.dtype)


# ---------------------------------------------------------------------------
# One-time packing: weights / biases / masks at their real (narrow) shapes
# ---------------------------------------------------------------------------
def prepare_network(params, mask_dict, f_in, dtype=jnp.float32):
    """Pack params + masks once.  No 128-lane padding: BlockSpec dims that
    equal the full array extent are legal even when < 128, and padding would
    only inflate HBM/VMEM traffic and MXU push work."""
    def row(v, n):
        if v is None:
            return jnp.zeros((1, n), dtype)
        return jnp.asarray(v, dtype).reshape(1, n)

    packed = [row(mask_dict.get("input"), f_in)]
    acts = []
    out_features = f_in
    for (w, b), act_name, act_idx in params:
        w = jnp.asarray(w, dtype)
        k, n = w.shape
        # Toy-MLP kernel: layer widths small enough for whole-weight residency.
        assert k <= 512 and n <= 512, "wider layers would need K/N tiling"
        packed.append(w)
        packed.append(row(b, n))
        packed.append(row(mask_dict.get(act_idx), n))
        acts.append(act_name)
        out_features = n
    return tuple(packed), tuple(acts), out_features


# ---------------------------------------------------------------------------
# Forward wrapper (single pallas_call, no wrapper-side pad/slice in the
# common case)
# ---------------------------------------------------------------------------
def network_masker_forward(x, packed, acts, out_features):
    B, f_in = x.shape
    dtype = x.dtype
    kernel = functools.partial(fused_forward_kernel, acts=acts)
    n_inputs = 1 + len(packed)

    if B <= GRIDLESS_MAX_ROWS:
        # Gridless: everything VMEM-resident, exactly one launch, zero
        # padding / slicing anywhere.
        return pl.pallas_call(
            kernel,
            out_shape=jax.ShapeDtypeStruct((B, out_features), dtype),
            in_specs=[pl.BlockSpec(memory_space=pltpu.MemorySpace.VMEM)] * n_inputs,
            out_specs=pl.BlockSpec(memory_space=pltpu.MemorySpace.VMEM),
        )(x, *packed)

    # Streaming path: tile only the batch axis; params stay VMEM-resident
    # (their block index never changes across the grid).  Input and output
    # keep their real narrow feature widths.
    bp = pl.cdiv(B, BATCH_TILE) * BATCH_TILE
    x_in = x if bp == B else jnp.pad(x, ((0, bp - B), (0, 0)))  # batch-dim only
    x_spec = pl.BlockSpec((BATCH_TILE, f_in), lambda i: (i, 0))
    o_spec = pl.BlockSpec((BATCH_TILE, out_features), lambda i: (i, 0))
    const_specs = [pl.BlockSpec(p.shape, lambda i: (0, 0)) for p in packed]
    out_p = pl.pallas_call(
        kernel,
        out_shape=jax.ShapeDtypeStruct((bp, out_features), dtype),
        grid=(bp // BATCH_TILE,),
        in_specs=[x_spec] + const_specs,
        out_specs=o_spec,
        compiler_params=pltpu.CompilerParams(
            dimension_semantics=("parallel",)),
    )(x_in, *packed)
    return out_p if bp == B else out_p[:B]


# ---------------------------------------------------------------------------
# Pure-JAX reference (mirrors the PyTorch NetworkMasker semantics)
# ---------------------------------------------------------------------------
def network_masker_reference(x, params, mask_dict):
    def mk(mask, n):
        return (jnp.asarray(mask, x.dtype).reshape(1, -1)
                if mask is not None else jnp.zeros((1, n), x.dtype))

    if "input" in mask_dict:
        m = mk(mask_dict["input"], x.shape[1])
        x = jnp.where(m == 1.0, 1.0, jnp.where(m == -1.0, 0.0, x))
    for (w, b), act_name, act_idx in params:
        pre = x @ w + b
        m = mk(mask_dict.get(act_idx), w.shape[1])
        if act_name == "relu":
            a = jnp.maximum(pre, 0.0)
            out = jnp.where(m == 1.0, pre, jnp.where(m == -1.0, 0.0, a))
        elif act_name == "tanh":
            a = jnp.tanh(pre)
            out = jnp.where(m == 1.0, 1.0, jnp.where(m == -1.0, -1.0, a))
        elif act_name == "sigmoid":
            a = jax.nn.sigmoid(pre)
            out = jnp.where(m == 1.0, 1.0, jnp.where(m == -1.0, 0.0, a))
        else:
            out = pre
        x = out
    return x


# ---------------------------------------------------------------------------
# Main
# ---------------------------------------------------------------------------
if __name__ == "__main__":
    key = jax.random.PRNGKey(0)
    B, F_IN, H, F_OUT = 8, 16, 32, 8

    k = jax.random.split(key, 9)
    w0 = jax.random.normal(k[0], (F_IN, H), jnp.float32) * 0.2
    b0 = jax.random.normal(k[1], (H,), jnp.float32) * 0.1
    w1 = jax.random.normal(k[2], (H, H), jnp.float32) * 0.2
    b1 = jax.random.normal(k[3], (H,), jnp.float32) * 0.1
    w2 = jax.random.normal(k[4], (H, F_OUT), jnp.float32) * 0.2
    b2 = jax.random.normal(k[5], (F_OUT,), jnp.float32) * 0.1

    x = jax.random.normal(k[6], (B, F_IN), jnp.float32)

    # network: Linear->ReLU ("1"), Linear->Tanh ("3"), Linear->Sigmoid ("5")
    params = [
        ((w0, b0), "relu", "1"),
        ((w1, b1), "tanh", "3"),
        ((w2, b2), "sigmoid", "5"),
    ]

    def make_mask(n, seed):
        vals = jax.random.randint(jax.random.PRNGKey(seed), (n,), 0, 3)
        return vals.astype(jnp.float32) - 1.0  # values in {-1, 0, 1}

    mask_dict = {
        "input": make_mask(F_IN, 1),
        "1": make_mask(H, 2),
        "3": make_mask(H, 3),
        "5": make_mask(F_OUT, 4),
    }

    # One-time packing of params + masks (real shapes, no lane padding).
    packed, acts, out_features = prepare_network(params, mask_dict, F_IN)
    fwd = jax.jit(functools.partial(
        network_masker_forward, packed=packed, acts=acts,
        out_features=out_features))

    # Slightly looser atol than f32 epsilon: the fused kernel uses the EUP's
    # tanh-based sigmoid, the reference uses jax.nn.sigmoid.
    RTOL, ATOL = 1e-5, 2e-5

    # 1) Small batch: gridless fused kernel (whole arrays in VMEM).
    out = jax.block_until_ready(fwd(x))
    ref = network_masker_reference(x, params, mask_dict)
    assert out.shape == (B, F_OUT), out.shape
    assert jnp.allclose(out, ref, rtol=RTOL, atol=ATOL), (
        "small-batch mismatch vs reference:\n%s\n%s" % (out, ref))

    # 2) Large batch, tile-divisible: batch-tiled "parallel" grid path.
    B_LARGE = 8192
    x_large = jax.random.normal(k[7], (B_LARGE, F_IN), jnp.float32)
    out_l = jax.block_until_ready(fwd(x_large))
    ref_l = network_masker_reference(x_large, params, mask_dict)
    assert out_l.shape == (B_LARGE, F_OUT), out_l.shape
    assert jnp.allclose(out_l, ref_l, rtol=RTOL, atol=ATOL), (
        "large-batch mismatch vs reference")

    # 3) Large ragged batch: exercises the batch-dim pad/slice fallback.
    B_RAGGED = 5000
    x_rag = jax.random.normal(k[8], (B_RAGGED, F_IN), jnp.float32)
    out_r = jax.block_until_ready(fwd(x_rag))
    ref_r = network_masker_reference(x_rag, params, mask_dict)
    assert out_r.shape == (B_RAGGED, F_OUT), out_r.shape
    assert jnp.allclose(out_r, ref_r, rtol=RTOL, atol=ATOL), (
        "ragged-batch mismatch vs reference")

    print("KERNEL_OK")
</pallas_src>

<mosaic_0001>
module attributes {stable_mosaic.version = 11 : i64} {
  func.func @fused_forward_kernel(%arg0: memref<8x16xf32, #tpu.memory_space<vmem>>, %arg1: memref<1x16xf32, #tpu.memory_space<vmem>>, %arg2: memref<16x32xf32, #tpu.memory_space<vmem>>, %arg3: memref<1x32xf32, #tpu.memory_space<vmem>>, %arg4: memref<1x32xf32, #tpu.memory_space<vmem>>, %arg5: memref<32x32xf32, #tpu.memory_space<vmem>>, %arg6: memref<1x32xf32, #tpu.memory_space<vmem>>, %arg7: memref<1x32xf32, #tpu.memory_space<vmem>>, %arg8: memref<32x8xf32, #tpu.memory_space<vmem>>, %arg9: memref<1x8xf32, #tpu.memory_space<vmem>>, %arg10: memref<1x8xf32, #tpu.memory_space<vmem>>, %arg11: memref<8x8xf32, #tpu.memory_space<vmem>>) attributes {dimension_semantics = [], scalar_prefetch = 0 : i64, scratch_operands = 0 : i64, tpu.core_type = #tpu.core_type<tc>} {
    %c0 = arith.constant 0 : index
    %c0_0 = arith.constant 0 : index
    %0 = vector.load %arg1[%c0, %c0_0] : memref<1x16xf32, #tpu.memory_space<vmem>>, vector<1x16xf32>
    %cst = arith.constant 0.000000e+00 : f32
    %1 = vector.broadcast %cst : f32 to vector<1x16xf32>
    %2 = arith.cmpf one, %0, %1 : vector<1x16xf32>
    %cst_1 = arith.constant 1.000000e+00 : f32
    %3 = vector.broadcast %cst_1 : f32 to vector<1x16xf32>
    %4 = arith.addf %0, %3 : vector<1x16xf32>
    %cst_2 = arith.constant 5.000000e-01 : f32
    %5 = vector.broadcast %cst_2 : f32 to vector<1x16xf32>
    %6 = arith.mulf %4, %5 : vector<1x16xf32>
    %c0_3 = arith.constant 0 : index
    %c0_4 = arith.constant 0 : index
    %7 = vector.load %arg0[%c0_3, %c0_4] : memref<8x16xf32, #tpu.memory_space<vmem>>, vector<8x16xf32>
    %8 = vector.shape_cast %2 : vector<1x16xi1> to vector<1x16xi1>
    %9 = vector.broadcast %8 : vector<1x16xi1> to vector<8x16xi1>
    %10 = vector.shape_cast %6 : vector<1x16xf32> to vector<1x16xf32>
    %11 = vector.broadcast %10 : vector<1x16xf32> to vector<8x16xf32>
    %12 = arith.select %9, %11, %7 : vector<8x16xi1>, vector<8x16xf32>
    %c0_5 = arith.constant 0 : index
    %c0_6 = arith.constant 0 : index
    %13 = vector.load %arg2[%c0_5, %c0_6] : memref<16x32xf32, #tpu.memory_space<vmem>>, vector<16x32xf32>
    %cst_7 = arith.constant dense<0.000000e+00> : vector<8x32xf32>
    %14 = tpu.matmul %12, %13, %cst_7 {dimension_numbers = #tpu.dot_dimension_numbers<[1], [0], [0], [1], [0, 0, 1, 1], [], []>} : vector<8x16xf32>, vector<16x32xf32>, vector<8x32xf32> -> vector<8x32xf32>
    %c0_8 = arith.constant 0 : index
    %c0_9 = arith.constant 0 : index
    %15 = vector.load %arg3[%c0_8, %c0_9] : memref<1x32xf32, #tpu.memory_space<vmem>>, vector<1x32xf32>
    %16 = vector.broadcast %15 : vector<1x32xf32> to vector<8x32xf32>
    %17 = arith.addf %14, %16 : vector<8x32xf32>
    %c0_10 = arith.constant 0 : index
    %c0_11 = arith.constant 0 : index
    %18 = vector.load %arg4[%c0_10, %c0_11] : memref<1x32xf32, #tpu.memory_space<vmem>>, vector<1x32xf32>
    %cst_12 = arith.constant 0.000000e+00 : f32
    %19 = vector.broadcast %cst_12 : f32 to vector<8x32xf32>
    %20 = arith.maximumf %17, %19 : vector<8x32xf32>
    %cst_13 = arith.constant 1.000000e+00 : f32
    %21 = vector.broadcast %cst_13 : f32 to vector<1x32xf32>
    %22 = arith.cmpf oeq, %18, %21 : vector<1x32xf32>
    %cst_14 = arith.constant -1.000000e+00 : f32
    %23 = vector.broadcast %cst_14 : f32 to vector<1x32xf32>
    %24 = arith.cmpf oeq, %18, %23 : vector<1x32xf32>
    %cst_15 = arith.constant 0.000000e+00 : f32
    %25 = vector.shape_cast %24 : vector<1x32xi1> to vector<1x32xi1>
    %26 = vector.broadcast %25 : vector<1x32xi1> to vector<8x32xi1>
    %27 = vector.broadcast %cst_15 : f32 to vector<8x32xf32>
    %28 = arith.select %26, %27, %20 : vector<8x32xi1>, vector<8x32xf32>
    %29 = vector.shape_cast %22 : vector<1x32xi1> to vector<1x32xi1>
    %30 = vector.broadcast %29 : vector<1x32xi1> to vector<8x32xi1>
    %31 = arith.select %30, %17, %28 : vector<8x32xi1>, vector<8x32xf32>
    %c0_16 = arith.constant 0 : index
    %c0_17 = arith.constant 0 : index
    %32 = vector.load %arg5[%c0_16, %c0_17] : memref<32x32xf32, #tpu.memory_space<vmem>>, vector<32x32xf32>
    %cst_18 = arith.constant dense<0.000000e+00> : vector<8x32xf32>
    %33 = tpu.matmul %31, %32, %cst_18 {dimension_numbers = #tpu.dot_dimension_numbers<[1], [0], [0], [1], [0, 0, 1, 1], [], []>} : vector<8x32xf32>, vector<32x32xf32>, vector<8x32xf32> -> vector<8x32xf32>
    %c0_19 = arith.constant 0 : index
    %c0_20 = arith.constant 0 : index
    %34 = vector.load %arg6[%c0_19, %c0_20] : memref<1x32xf32, #tpu.memory_space<vmem>>, vector<1x32xf32>
    %35 = vector.broadcast %34 : vector<1x32xf32> to vector<8x32xf32>
    %36 = arith.addf %33, %35 : vector<8x32xf32>
    %c0_21 = arith.constant 0 : index
    %c0_22 = arith.constant 0 : index
    %37 = vector.load %arg7[%c0_21, %c0_22] : memref<1x32xf32, #tpu.memory_space<vmem>>, vector<1x32xf32>
    %cst_23 = arith.constant 0.000000e+00 : f32
    %38 = vector.broadcast %cst_23 : f32 to vector<1x32xf32>
    %39 = arith.cmpf one, %37, %38 : vector<1x32xf32>
    %40 = math.tanh %36 : vector<8x32xf32>
    %41 = vector.shape_cast %39 : vector<1x32xi1> to vector<1x32xi1>
    %42 = vector.broadcast %41 : vector<1x32xi1> to vector<8x32xi1>
    %43 = vector.shape_cast %37 : vector<1x32xf32> to vector<1x32xf32>
    %44 = vector.broadcast %43 : vector<1x32xf32> to vector<8x32xf32>
    %45 = arith.select %42, %44, %40 : vector<8x32xi1>, vector<8x32xf32>
    %c0_24 = arith.constant 0 : index
    %c0_25 = arith.constant 0 : index
    %46 = vector.load %arg8[%c0_24, %c0_25] : memref<32x8xf32, #tpu.memory_space<vmem>>, vector<32x8xf32>
    %cst_26 = arith.constant dense<0.000000e+00> : vector<8x8xf32>
    %47 = tpu.matmul %45, %46, %cst_26 {dimension_numbers = #tpu.dot_dimension_numbers<[1], [0], [0], [1], [0, 0, 1, 1], [], []>} : vector<8x32xf32>, vector<32x8xf32>, vector<8x8xf32> -> vector<8x8xf32>
    %c0_27 = arith.constant 0 : index
    %c0_28 = arith.constant 0 : index
    %48 = vector.load %arg9[%c0_27, %c0_28] : memref<1x8xf32, #tpu.memory_space<vmem>>, vector<1x8xf32>
    %49 = vector.broadcast %48 : vector<1x8xf32> to vector<8x8xf32>
    %50 = arith.addf %47, %49 : vector<8x8xf32>
    %c0_29 = arith.constant 0 : index
    %c0_30 = arith.constant 0 : index
    %51 = vector.load %arg10[%c0_29, %c0_30] : memref<1x8xf32, #tpu.memory_space<vmem>>, vector<1x8xf32>
    %cst_31 = arith.constant 5.000000e-01 : f32
    %52 = vector.broadcast %cst_31 : f32 to vector<8x8xf32>
    %53 = arith.mulf %52, %50 : vector<8x8xf32>
    %54 = math.tanh %53 : vector<8x8xf32>
    %cst_32 = arith.constant 5.000000e-01 : f32
    %55 = vector.broadcast %cst_32 : f32 to vector<8x8xf32>
    %56 = arith.mulf %55, %54 : vector<8x8xf32>
    %cst_33 = arith.constant 5.000000e-01 : f32
    %57 = vector.broadcast %cst_33 : f32 to vector<8x8xf32>
    %58 = arith.addf %56, %57 : vector<8x8xf32>
    %cst_34 = arith.constant 0.000000e+00 : f32
    %59 = vector.broadcast %cst_34 : f32 to vector<1x8xf32>
    %60 = arith.cmpf one, %51, %59 : vector<1x8xf32>
    %cst_35 = arith.constant 1.000000e+00 : f32
    %61 = vector.broadcast %cst_35 : f32 to vector<1x8xf32>
    %62 = arith.addf %51, %61 : vector<1x8xf32>
    %cst_36 = arith.constant 5.000000e-01 : f32
    %63 = vector.broadcast %cst_36 : f32 to vector<1x8xf32>
    %64 = arith.mulf %62, %63 : vector<1x8xf32>
    %65 = vector.shape_cast %60 : vector<1x8xi1> to vector<1x8xi1>
    %66 = vector.broadcast %65 : vector<1x8xi1> to vector<8x8xi1>
    %67 = vector.shape_cast %64 : vector<1x8xf32> to vector<1x8xf32>
    %68 = vector.broadcast %67 : vector<1x8xf32> to vector<8x8xf32>
    %69 = arith.select %66, %68, %58 : vector<8x8xi1>, vector<8x8xf32>
    %c0_37 = arith.constant 0 : index
    %c0_38 = arith.constant 0 : index
    %70 = vector.load %arg11[%c0_37, %c0_38] : memref<8x8xf32, #tpu.memory_space<vmem>>, vector<8x8xf32>
    tpu.vector_store %arg11[%c0_37, %c0_38], %69 {strides = array<i32>} : memref<8x8xf32, #tpu.memory_space<vmem>>, vector<8x8xf32>,
    return
  }
}

</mosaic_0001>

<llo_original>
// kernel: network_masker_forward.1
$region0: #{network_masker_forward.1}
  #allocation0 [shape = 'u32[]', space=smem, size = 0x4, offset = 0x4, fixed_abs, tag = 'smem constant byte address 0x4 - core index']
  #allocation1 [shape = 'u32[72,128]{1,0:T(1,128)}', space=vmem, size = 0x9000, scoped, tag = 'internal scratch']
  %s0 = inlined_call_operand.hbm [shape: f32[8,16], index: 0, kind: input, shape index: {}]
  %s1 = inlined_call_operand.hbm [shape: f32[1,16], index: 1, kind: input, shape index: {}]
  %s2 = inlined_call_operand.hbm [shape: f32[16,32], index: 2, kind: input, shape index: {}]
  %s3 = inlined_call_operand.hbm [shape: f32[1,32], index: 3, kind: input, shape index: {}]
  %s4 = inlined_call_operand.hbm [shape: f32[1,32], index: 4, kind: input, shape index: {}]
  %s5 = inlined_call_operand.hbm [shape: f32[32,32], index: 5, kind: input, shape index: {}]
  %s6 = inlined_call_operand.vmem [shape: f32[1,32], index: 6, kind: input, shape index: {}]
  %s7 = inlined_call_operand.vmem [shape: f32[1,32], index: 7, kind: input, shape index: {}]
  %s8 = inlined_call_operand.hbm [shape: f32[32,8], index: 8, kind: input, shape index: {}]
  %s9 = inlined_call_operand.vmem [shape: f32[1,8], index: 9, kind: input, shape index: {}]
  %s10 = inlined_call_operand.vmem [shape: f32[1,8], index: 10, kind: input, shape index: {}]
  %s11 = inlined_call_operand.hbm [shape: f32[8,8], index: 11, kind: output, shape index: {}]
  %s12 = sld [smem:[#allocation0]]
  $region82: #{network_masker_forward.1} parent=0
    _
  %s14 = ssub.s32 1, %s12
  %s15 = scalar_select 0, %s14, %s12
  $region1: #{network_masker_forward.1} parent=0
    #allocation2 [shape = 'u8[4096]{0}', space=vmem, size = 0x1000, scoped, tag = 'input window, operand 0, single buffered']
    #allocation3 [shape = 's32[1]{0}', space=sflag, size = 0x4, scoped, tag = 'scoped memory for network_masker_forward.1']
    #allocation4 [shape = 's32[1]{0}', space=sflag, size = 0x4, scoped, tag = 'scoped memory for network_masker_forward.1']
    #allocation5 [shape = 'u8[512]{0}', space=vmem, size = 0x400, scoped, tag = 'input window, operand 1, single buffered']
    #allocation6 [shape = 's32[1]{0}', space=sflag, size = 0x4, scoped, tag = 'scoped memory for network_masker_forward.1']
    #allocation7 [shape = 'u8[8192]{0}', space=vmem, size = 0x2000, scoped, tag = 'input window, operand 2, single buffered']
    #allocation8 [shape = 'u8[512]{0}', space=vmem, size = 0x400, scoped, tag = 'input window, operand 3, single buffered']
    #allocation9 [shape = 's32[1]{0}', space=sflag, size = 0x4, scoped, tag = 'scoped memory for network_masker_forward.1']
    #allocation10 [shape = 'u8[512]{0}', space=vmem, size = 0x400, scoped, tag = 'input window, operand 4, single buffered']
    #allocation11 [shape = 'u8[16384]{0}', space=vmem, size = 0x4000, scoped, tag = 'input window, operand 5, single buffered']
    #allocation12 [shape = 's32[1]{0}', space=sflag, size = 0x4, scoped, tag = 'scoped memory for network_masker_forward.1']
    #allocation13 [shape = 'u8[16384]{0}', space=vmem, size = 0x4000, scoped, tag = 'input window, operand 8, single buffered']
    #allocation14 [shape = 'u8[4096]{0}', space=vmem, size = 0x1000, scoped, tag = 'output window, operand 0, single buffered']
    %16 = vsyncpa [#allocation3], 0
    %17 = vsyncpa [#allocation6], 0
    %18 = vsyncpa [#allocation9], 0
    %19 = vsyncpa [#allocation12], 0
    %20 = vsyncpa [#allocation4], 0
    // Predicated region
    $region2: #{network_masker_forward.1} parent=1 // pred_check
      _
    $region3: #{network_masker_forward.1} parent=1 // pred_check_branch
      %22 = sbr.rel (0) target = $region5
    $region4: #{network_masker_forward.1} parent=1 // pred_region
      %24 = vsyncadd [#allocation3], 0
      %s26 = sshll.u32 %s0, 4
      %s27 = int_to_ptr.hbm [resolvable:$true] %s26
      %s28 = sshll.u32 [#allocation2], 4
      %s29 = int_to_ptr.vmem [resolvable:$true] %s28
      %31 = dma.hbm_to_vmem [thread:$0]  %s27, 128, %s29, [#allocation3]
    $region5: #{network_masker_forward.1} parent=1 // pred_fallthru
      _
    // Predicated region
    $region6: #{network_masker_forward.1} parent=1 // pred_check
      _
    $region7: #{network_masker_forward.1} parent=1 // pred_check_branch
      %33 = sbr.rel (0) target = $region9
    $region8: #{network_masker_forward.1} parent=1 // pred_region
      %35 = vsyncadd [#allocation6], 0
      %s37 = sshll.u32 %s1, 4
      %s38 = int_to_ptr.hbm [resolvable:$true] %s37
      %s39 = sshll.u32 [#allocation5], 4
      %s40 = int_to_ptr.vmem [resolvable:$true] %s39
      %42 = dma.hbm_to_vmem [thread:$0]  %s38, 16, %s40, [#allocation6]
    $region9: #{network_masker_forward.1} parent=1 // pred_fallthru
      _
    // Predicated region
    $region10: #{network_masker_forward.1} parent=1 // pred_check
      _
    $region11: #{network_masker_forward.1} parent=1 // pred_check_branch
      %44 = sbr.rel (0) target = $region13
    $region12: #{network_masker_forward.1} parent=1 // pred_region
      %46 = vsyncadd [#allocation6], 0
      %s47 = sshll.u32 %s2, 4
      %s48 = int_to_ptr.hbm [resolvable:$true] %s47
      %s49 = sshll.u32 [#allocation7], 4
      %s50 = int_to_ptr.vmem [resolvable:$true] %s49
      %55 = dma.hbm_to_vmem [thread:$0]  %s48, 256, %s50, [#allocation6], 128, 128, 8
    $region13: #{network_masker_forward.1} parent=1 // pred_fallthru
      _
    // Predicated region
    $region14: #{network_masker_forward.1} parent=1 // pred_check
      _
    $region15: #{network_masker_forward.1} parent=1 // pred_check_branch
      %57 = sbr.rel (0) target = $region17
    $region16: #{network_masker_forward.1} parent=1 // pred_region
      %59 = vsyncadd [#allocation9], 0
      %s61 = sshll.u32 %s3, 4
      %s62 = int_to_ptr.hbm [resolvable:$true] %s61
      %s63 = sshll.u32 [#allocation8], 4
      %s64 = int_to_ptr.vmem [resolvable:$true] %s63
      %66 = dma.hbm_to_vmem [thread:$0]  %s62, 16, %s64, [#allocation9]
    $region17: #{network_masker_forward.1} parent=1 // pred_fallthru
      _
    // Predicated region
    $region18: #{network_masker_forward.1} parent=1 // pred_check
      _
    $region19: #{network_masker_forward.1} parent=1 // pred_check_branch
      %68 = sbr.rel (0) target = $region21
    $region20: #{network_masker_forward.1} parent=1 // pred_region
      %70 = vsyncadd [#allocation9], 0
      %s72 = sshll.u32 %s4, 4
      %s73 = int_to_ptr.hbm [resolvable:$true] %s72
      %s74 = sshll.u32 [#allocation10], 4
      %s75 = int_to_ptr.vmem [resolvable:$true] %s74
      %77 = dma.hbm_to_vmem [thread:$0]  %s73, 16, %s75, [#allocation9]
    $region21: #{network_masker_forward.1} parent=1 // pred_fallthru
      _
    // Predicated region
    $region22: #{network_masker_forward.1} parent=1 // pred_check
      _
    $region23: #{network_masker_forward.1} parent=1 // pred_check_branch
      %79 = sbr.rel (0) target = $region25
    $region24: #{network_masker_forward.1} parent=1 // pred_region
      %81 = vsyncadd [#allocation12], 0
      %s82 = sshll.u32 %s5, 4
      %s83 = int_to_ptr.hbm [resolvable:$true] %s82
      %s84 = sshll.u32 [#allocation11], 4
      %s85 = int_to_ptr.vmem [resolvable:$true] %s84
      %90 = dma.hbm_to_vmem [thread:$0]  %s83, 512, %s85, [#allocation12], 128, 128, 8
    $region25: #{network_masker_forward.1} parent=1 // pred_fallthru
      _
    // Predicated region
    $region26: #{network_masker_forward.1} parent=1 // pred_check
      _
    $region27: #{network_masker_forward.1} parent=1 // pred_check_branch
      %92 = sbr.rel (0) target = $region29
    $region28: #{network_masker_forward.1} parent=1 // pred_region
      _
    $region29: #{network_masker_forward.1} parent=1 // pred_fallthru
      _
    // Predicated region
    $region30: #{network_masker_forward.1} parent=1 // pred_check
      _
    $region31: #{network_masker_forward.1} parent=1 // pred_check_branch
      %94 = sbr.rel (0) target = $region33
    $region32: #{network_masker_forward.1} parent=1 // pred_region
      _
    $region33: #{network_masker_forward.1} parent=1 // pred_fallthru
      _
    // Predicated region
    $region34: #{network_masker_forward.1} parent=1 // pred_check
      _
    $region35: #{network_masker_forward.1} parent=1 // pred_check_branch
      %96 = sbr.rel (0) target = $region37
    $region36: #{network_masker_forward.1} parent=1 // pred_region
      %98 = vsyncadd [#allocation12], 0
      %s99 = sshll.u32 %s8, 4
      %s100 = int_to_ptr.hbm [resolvable:$true] %s99
      %s101 = sshll.u32 [#allocation13], 4
      %s102 = int_to_ptr.vmem [resolvable:$true] %s101
      %107 = dma.hbm_to_vmem [thread:$0]  %s100, 512, %s102, [#allocation12], 128, 128, 8
    $region37: #{network_masker_forward.1} parent=1 // pred_fallthru
      _
    // Predicated region
    $region38: #{network_masker_forward.1} parent=1 // pred_check
      _
    $region39: #{network_masker_forward.1} parent=1 // pred_check_branch
      %109 = sbr.rel (0) target = $region41
    $region40: #{network_masker_forward.1} parent=1 // pred_region
      _
    $region41: #{network_masker_forward.1} parent=1 // pred_fallthru
      _
    // Predicated region
    $region42: #{network_masker_forward.1} parent=1 // pred_check
      _
    $region43: #{network_masker_forward.1} parent=1 // pred_check_branch
      %111 = sbr.rel (0) target = $region45
    $region44: #{network_masker_forward.1} parent=1 // pred_region
      _
    $region45: #{network_masker_forward.1} parent=1 // pred_fallthru
      _
    // Predicated region
    $region46: #{network_masker_forward.1} parent=1 // pred_check
      _
    $region47: #{network_masker_forward.1} parent=1 // pred_check_branch
      %113 = sbr.rel (0) target = $region49
    $region48: #{network_masker_forward.1} parent=1 // pred_region
      %115 = dma.done [#allocation3], 128
    $region49: #{network_masker_forward.1} parent=1 // pred_fallthru
      _
    // Predicated region
    $region50: #{network_masker_forward.1} parent=1 // pred_check
      _
    $region51: #{network_masker_forward.1} parent=1 // pred_check_branch
      %117 = sbr.rel (0) target = $region53
    $region52: #{network_masker_forward.1} parent=1 // pred_region
      %119 = dma.done [#allocation6], 16
    $region53: #{network_masker_forward.1} parent=1 // pred_fallthru
      _
    // Predicated region
    $region54: #{network_masker_forward.1} parent=1 // pred_check
      _
    $region55: #{network_masker_forward.1} parent=1 // pred_check_branch
      %121 = sbr.rel (0) target = $region57
    $region56: #{network_masker_forward.1} parent=1 // pred_region
      %123 = dma.done [#allocation6], 256
    $region57: #{network_masker_forward.1} parent=1 // pred_fallthru
      _
    // Predicated region
    $region58: #{network_masker_forward.1} parent=1 // pred_check
      _
    $region59: #{network_masker_forward.1} parent=1 // pred_check_branch
      %125 = sbr.rel (0) target = $region61
    $region60: #{network_masker_forward.1} parent=1 // pred_region
      %127 = dma.done [#allocation9], 16
    $region61: #{network_masker_forward.1} parent=1 // pred_fallthru
      _
    // Predicated region
    $region62: #{network_masker_forward.1} parent=1 // pred_check
      _
    $region63: #{network_masker_forward.1} parent=1 // pred_check_branch
      %129 = sbr.rel (0) target = $region65
    $region64: #{network_masker_forward.1} parent=1 // pred_region
      %131 = dma.done [#allocation9], 16
    $region65: #{network_masker_forward.1} parent=1 // pred_fallthru
      _
    // Predicated region
    $region66: #{network_masker_forward.1} parent=1 // pred_check
      _
    $region67: #{network_masker_forward.1} parent=1 // pred_check_branch
      %133 = sbr.rel (0) target = $region69
    $region68: #{network_masker_forward.1} parent=1 // pred_region
      %135 = dma.done [#allocation12], 512
    $region69: #{network_masker_forward.1} parent=1 // pred_fallthru
      _
    // Predicated region
    $region70: #{network_masker_forward.1} parent=1 // pred_check
      _
    $region71: #{network_masker_forward.1} parent=1 // pred_check_branch
      %137 = sbr.rel (0) target = $region73
    $region72: #{network_masker_forward.1} parent=1 // pred_region
      %139 = dma.done [#allocation12], 512
    $region73: #{network_masker_forward.1} parent=1 // pred_fallthru
      _
    %v140 = vld [vmem:[#allocation5] sm:$0x1]
    %vm141 = vcmp.ne.f32.partialorder %v140, 0.0
    %v142 = vadd.f32 %v140, 1.0
    %v143 = vmul.f32 %v142, 0.5
    %v144 = vld [vmem:[#allocation2] sm:$0xff]
    %v145 = vsel %vm141, 1, 0
    %v146 = vperm.slane %v145, 0
    %vm147 = vcmp.eq.s32.totalorder %v146, 1
    %v149 = vperm.slane %v143, 0
    %v151 = vsel %vm147, %v149, %v144
    %v152 = vld [vmem:[#allocation7] sm:$0xff]
    %v153 = vld [vmem:[#allocation7 + $0x8] sm:$0xff]
    %v154 = vld [vmem:[#allocation8] sm:$0x1]
    %v156 = vperm.slane %v154, 0
    %vm158 = vcmask 130048
    %v160 = vsel %vm158, %v151, 0
    %162 = vmatpush.msra.mxu0 0.0
    %163 = vmatpush.msra.mxu0 0.0
    %164 = vmatpush.msra.mxu0 0.0
    %165 = vmatpush.msra.mxu0 0.0
    %166 = vmatpush.msra.mxu0 0.0
    %167 = vmatpush.msra.mxu0 0.0
    %168 = vmatpush.msra.mxu0 0.0
    %169 = vmatpush.msra.mxu0 0.0
    %170 = vmatpush.msra.mxu0 0.0
    %171 = vmatpush.msra.mxu0 0.0
    %172 = vmatpush.msra.mxu0 0.0
    %173 = vmatpush.msra.mxu0 0.0
    %174 = vmatpush.msra.mxu0 0.0
    %175 = vmatpush.msra.mxu0 0.0
    %176 = vmatpush.msra.mxu0 %v153
    %177 = vmatpush.msra.mxu0 %v152
    %178 = vmatmul.f32.gmra.mxu0 %v160
    %v179 = vpop.f32.mrf.mxu0
    %v180 = vadd.f32 %v156, %v179
    %181 = vdwg.mxu0
    %v182 = vld [vmem:[#allocation10] sm:$0x1]
    %v183 = vmax.f32 %v180, 0.0
    %vm184 = vcmp.eq.f32.partialorder %v182, 1.0
    %vm185 = vcmp.eq.f32.partialorder %v182, -1.0
    %v186 = vsel %vm185, 1, 0
    %v187 = vperm.slane %v186, 0
    %vm188 = vcmp.eq.s32.totalorder %v187, 1
    %v189 = vsel %vm188, 0.0, %v183
    %v190 = vsel %vm184, 1, 0
    %v191 = vperm.slane %v190, 0
    %vm192 = vcmp.eq.s32.totalorder %v191, 1
    %v193 = vsel %vm192, %v180, %v189
    %v194 = vld [vmem:[#allocation11] sm:$0xff]
    %v195 = vld [vmem:[#allocation11 + $0x8] sm:$0xff]
    %v196 = vld [vmem:[#allocation11 + $0x10] sm:$0xff]
    %v197 = vld [vmem:[#allocation11 + $0x18] sm:$0xff]
    %v198 = vld [vmem:[%s6] sm:$0x1]
    %v200 = vperm.slane %v198, 0
    %vm202 = vcmask 261120
    %v204 = vsel %vm202, %v193, 0
    %206 = vmatpush.msra.mxu0 0.0
    %207 = vmatpush.msra.mxu0 0.0
    %208 = vmatpush.msra.mxu0 0.0
    %209 = vmatpush.msra.mxu0 0.0
    %210 = vmatpush.msra.mxu0 0.0
    %211 = vmatpush.msra.mxu0 0.0
    %212 = vmatpush.msra.mxu0 0.0
    %213 = vmatpush.msra.mxu0 0.0
    %214 = vmatpush.msra.mxu0 0.0
    %215 = vmatpush.msra.mxu0 0.0
    %216 = vmatpush.msra.mxu0 0.0
    %217 = vmatpush.msra.mxu0 0.0
    %218 = vmatpush.msra.mxu0 %v197
    %219 = vmatpush.msra.mxu0 %v196
    %220 = vmatpush.msra.mxu0 %v195
    %221 = vmatpush.msra.mxu0 %v194
    %222 = vmatmul.f32.gmra.mxu0 %v204
    %v223 = vpop.f32.mrf.mxu0
    %v224 = vadd.f32 %v200, %v223
    %225 = vdwg.mxu0
    %v226 = vld [vmem:[%s7] sm:$0x1]
    %vm227 = vcmp.ne.f32.partialorder %v226, 0.0
    %v228 = vtanh.pop %v224
    %v229 = vsel %vm227, 1, 0
    %v230 = vperm.slane %v229, 0
    %vm231 = vcmp.eq.s32.totalorder %v230, 1
    %v233 = vperm.slane %v226, 0
    %v235 = vsel %vm231, %v233, %v228
    %v236 = vld [vmem:[#allocation13] sm:$0xff]
    %v237 = vld [vmem:[#allocation13 + $0x8] sm:$0xff]
    %v238 = vld [vmem:[#allocation13 + $0x10] sm:$0xff]
    %v239 = vld [vmem:[#allocation13 + $0x18] sm:$0xff]
    %v240 = vld [vmem:[%s9] sm:$0x1]
    %v242 = vperm.slane %v240, 0
    %v245 = vsel %vm202, %v235, 0
    %247 = vmatpush.msra.mxu0 0.0
    %248 = vmatpush.msra.mxu0 0.0
    %249 = vmatpush.msra.mxu0 0.0
    %250 = vmatpush.msra.mxu0 0.0
    %251 = vmatpush.msra.mxu0 0.0
    %252 = vmatpush.msra.mxu0 0.0
    %253 = vmatpush.msra.mxu0 0.0
    %254 = vmatpush.msra.mxu0 0.0
    %255 = vmatpush.msra.mxu0 0.0
    %256 = vmatpush.msra.mxu0 0.0
    %257 = vmatpush.msra.mxu0 0.0
    %258 = vmatpush.msra.mxu0 0.0
    %259 = vmatpush.msra.mxu0 %v239
    %260 = vmatpush.msra.mxu0 %v238
    %261 = vmatpush.msra.mxu0 %v237
    %262 = vmatpush.msra.mxu0 %v236
    %263 = vmatmul.f32.gmra.mxu0 %v245
    %v264 = vpop.f32.mrf.mxu0
    %v265 = vadd.f32 %v242, %v264
    %266 = vdwg.mxu0
    %v267 = vld [vmem:[%s10] sm:$0x1]
    %v268 = vmul.f32 %v265, 0.5
    %v269 = vtanh.pop %v268
    %v270 = vmul.f32 %v269, 0.5
    %v271 = vadd.f32 %v270, 0.5
    %vm272 = vcmp.ne.f32.partialorder %v267, 0.0
    %v273 = vadd.f32 %v267, 1.0
    %v274 = vmul.f32 %v273, 0.5
    %v275 = vsel %vm272, 1, 0
    %v276 = vperm.slane %v275, 0
    %vm277 = vcmp.eq.s32.totalorder %v276, 1
    %v279 = vperm.slane %v274, 0
    %v281 = vsel %vm277, %v279, %v271
    %vm282 = vcmask 64512
    %283 = vst.msk [vmem:[#allocation14] sm:$0xff] %vm282, %v281
    // Predicated region
    $region74: #{network_masker_forward.1} parent=1 // pred_check
      _
    $region75: #{network_masker_forward.1} parent=1 // pred_check_branch
      %285 = sbr.rel (0) target = $region77
    $region76: #{network_masker_forward.1} parent=1 // pred_region
      %287 = vsyncadd [#allocation4], 0
      %s289 = sshll.u32 [#allocation14], 4
      %s290 = int_to_ptr.vmem [resolvable:$true] %s289
      %s291 = sshll.u32 %s11, 4
      %s292 = int_to_ptr.hbm [resolvable:$true] %s291
      %294 = dma.vmem_to_hbm [thread:$0]  %s290, 128, %s292, [#allocation4]
    $region77: #{network_masker_forward.1} parent=1 // pred_fallthru
      _
    // Predicated region
    $region78: #{network_masker_forward.1} parent=1 // pred_check
      _
    $region79: #{network_masker_forward.1} parent=1 // pred_check_branch
      %296 = sbr.rel (0) target = $region81
    $region80: #{network_masker_forward.1} parent=1 // pred_region
      %298 = dma.done [#allocation4], 128
    $region81: #{network_masker_forward.1} parent=1 // pred_fallthru
      _
    %299 = vsyncpa [#allocation3], 1
    %300 = vsyncpa [#allocation6], 1
    %301 = vsyncpa [#allocation9], 1
    %302 = vsyncpa [#allocation12], 1
    %303 = vsyncpa [#allocation4], 1

</llo_original>
